<compile_context>
chip_gen: v6e
topology: v6e:2x2x1
jax: 0.10.0
libtpu: 0.0.40
codegen_flags: <defaults>
</compile_context>

<pallas_src>
import jax
import jax.numpy as jnp
from jax.experimental import pallas as pl
from jax.experimental.pallas import tpu as pltpu


# ----------------------------------------------------------------------------
# Kernel
# ----------------------------------------------------------------------------
def _ffn_kernel(x_ref, w1_ref, b1_ref, wg_ref, w2_ref, b2_ref, o_ref,
                h_ref, acc_ref):
    # x_ref:   [TM, dim_p]     bf16   (changes with i only)
    # w1_ref:  [dim_p, hid_p]  bf16   (whole array, VMEM-resident, single buf)
    # b1_ref:  [1, hid_p]      f32    (whole array, VMEM-resident)
    # wg_ref:  [hid_p, 2*TH]   bf16   (streamed per k: [u_k cols | v_k cols])
    # w2_ref:  [TH, dim_p]     bf16   (streamed per k)
    # b2_ref:  [1, dim_p]      f32    (whole array, VMEM-resident)
    # o_ref:   [TM, dim_p]     bf16
    # h_ref:   [TM, hid_p]     bf16   scratch (fc1 output, reused across k)
    # acc_ref: [TM, dim_p]     f32    scratch (fc2 accumulator)
    k = pl.program_id(1)

    @pl.when(k == 0)
    def _():
        # fc1: x @ W1 + b1 (bf16 MXU inputs, f32 accumulate), cached as bf16.
        h = jnp.dot(x_ref[...], w1_ref[...],
                    preferred_element_type=jnp.float32) + b1_ref[...]
        h_ref[...] = h.astype(jnp.bfloat16)
        acc_ref[...] = jnp.zeros_like(acc_ref)

    # SwiGLU on this hidden block: one fused gate matmul, lane-aligned split
    # (TH is a multiple of 128, so the slices are free).
    th = wg_ref.shape[1] // 2
    g = jnp.dot(h_ref[...], wg_ref[...], preferred_element_type=jnp.float32)
    u = g[:, :th]
    v = g[:, th:]
    s = (u * (v * jax.nn.sigmoid(v))).astype(jnp.bfloat16)

    # fc2 partial product for this hidden block.
    acc_ref[...] += jnp.dot(s, w2_ref[...], preferred_element_type=jnp.float32)

    @pl.when(k == pl.num_programs(1) - 1)
    def _():
        # Dropout: identity in eval mode.
        o_ref[...] = (acc_ref[...] + b2_ref[...]).astype(o_ref.dtype)


# ----------------------------------------------------------------------------
# Helpers
# ----------------------------------------------------------------------------
def _round_up(n, m):
    return ((n + m - 1) // m) * m


def _pad2d(a, rows, cols):
    pr, pc = rows - a.shape[0], cols - a.shape[1]
    if pr or pc:
        a = jnp.pad(a, ((0, pr), (0, pc)))
    return a


def _pick_th(hid_p, target=512):
    """Hidden-block width: multiple of 128 dividing hid_p, <= target."""
    for th in (target, 256, 128):
        if th <= hid_p and hid_p % th == 0:
            return th
    return 128


def _vmem_budget_bytes():
    """Per-generation VMEM cap (~85% of physical: 128 MiB v5e/v6e, 64 MiB/TC v7x)."""
    try:
        cap = int(pltpu.get_tpu_info().vmem_capacity_bytes)
    except Exception:
        cap = 64 * 1024 * 1024  # conservative fallback, fits every generation
    return int(cap * 0.85)


def _vmem_bytes(tm_, th_, dim_p, hid_p):
    """Rough VMEM footprint for a given row tile / hidden-block width."""
    resident = dim_p * hid_p * 2 + (hid_p + dim_p) * 4        # w1 bf16 + b1/b2 f32 (single buf)
    streamed = 2 * (hid_p * 2 * th_ + th_ * dim_p) * 2        # gate + w2 blocks, double-buffered bf16
    io_tiles = 2 * (tm_ * dim_p * 2) * 2                      # x + out tiles, double-buffered bf16
    scratch = tm_ * hid_p * 2 + tm_ * dim_p * 4               # h (bf16) + fc2 acc (f32)
    temps = tm_ * hid_p * 4 + 4 * tm_ * th_ * 4               # fc1 f32 transient + gate f32 temps
    return resident + streamed + io_tiles + scratch + temps


# ----------------------------------------------------------------------------
# Parameter preparation (hoisted: runs once, not per forward call)
# ----------------------------------------------------------------------------
def prepare_params(params, dim, hidden_dim, th_target=512):
    """Pad to (8,128)-aligned shapes, cast to bf16 and pack gate weights once."""
    w1, b1, wg_u, wg_v, w2, b2 = params
    dim_p = _round_up(dim, 128)
    hid_p = _round_up(hidden_dim, 128)
    th = _pick_th(hid_p, th_target)
    nk = hid_p // th

    w1p = _pad2d(w1, dim_p, hid_p).astype(jnp.bfloat16)
    b1p = _pad2d(b1, 1, hid_p).astype(jnp.float32)
    w2p = _pad2d(w2, hid_p, dim_p).astype(jnp.bfloat16)
    b2p = _pad2d(b2, 1, dim_p).astype(jnp.float32)

    # Pack the two gate weights so hidden block k is one contiguous
    # [hid_p, 2*th] slab: columns [0:th] = wg_u block-k columns, [th:2*th] =
    # wg_v block-k columns -> one streamed DMA + one MXU matmul per k-step.
    wgu = _pad2d(wg_u, hid_p, hid_p).astype(jnp.bfloat16).reshape(hid_p, nk, th)
    wgv = _pad2d(wg_v, hid_p, hid_p).astype(jnp.bfloat16).reshape(hid_p, nk, th)
    wg = jnp.transpose(jnp.concatenate([wgu, wgv], axis=-1), (1, 0, 2))  # [nk, hid_p, 2*th]

    return {
        "w1": w1p, "b1": b1p, "wg": wg, "w2": w2p, "b2": b2p,
        "dim": dim, "hidden": hidden_dim,
        "dim_p": dim_p, "hid_p": hid_p, "th": th, "nk": nk,
    }


# ----------------------------------------------------------------------------
# Forward
# ----------------------------------------------------------------------------
def feed_forward(x, prepared, tm=None):
    """x: [B, S, dim] float32 -> [B, S, dim] float32 (FeedForward, eval mode)."""
    dim, dim_p = prepared["dim"], prepared["dim_p"]
    hid_p, th, nk = prepared["hid_p"], prepared["th"], prepared["nk"]
    B, S, _ = x.shape
    M = B * S

    vmem_budget = _vmem_budget_bytes()

    # Row tile: multiple of 16 (bf16 sublane packing); largest candidate that
    # fits the per-generation VMEM budget (512 typical on v5e/v6e, smaller on v7x).
    m_aligned = max(16, _round_up(M, 16))
    if tm is not None:
        TM = max(16, _round_up(min(tm, m_aligned), 16))
    else:
        TM = 16
        for cand in (512, 256, 128, 64, 32, 16):
            t = _round_up(min(cand, m_aligned), 16)
            if _vmem_bytes(t, th, dim_p, hid_p) <= vmem_budget:
                TM = t
                break
    M_pad = _round_up(M, TM)

    # Only the activation is prepared per call (weights were prepared once).
    x2d = x.reshape(M, dim).astype(jnp.bfloat16)
    x2d = jnp.pad(x2d, ((0, M_pad - M), (0, dim_p - dim)))

    grid = (M_pad // TM, nk)

    flops = 2 * M_pad * (dim_p * hid_p + 2 * hid_p * hid_p + hid_p * dim_p)
    bytes_accessed = (
        M_pad * dim_p * (2 + 2)                                   # x in + out (bf16)
        + dim_p * hid_p * 2 + (hid_p + dim_p) * 4                 # resident w1/b1/b2
        + (M_pad // TM) * (2 * hid_p * hid_p + hid_p * dim_p) * 2  # streamed wg/w2 per M tile
    )
    cost = pl.CostEstimate(flops=int(flops),
                           transcendentals=int(M_pad * hid_p),
                           bytes_accessed=int(bytes_accessed))

    # Grid-invariant operands: whole array in VMEM, single-buffered, DMA'd once.
    resident = pl.BlockSpec(memory_space=pltpu.MemorySpace.VMEM)

    out2d = pl.pallas_call(
        _ffn_kernel,
        out_shape=jax.ShapeDtypeStruct((M_pad, dim_p), jnp.bfloat16),
        grid=grid,
        in_specs=[
            pl.BlockSpec((TM, dim_p), lambda i, k: (i, 0)),              # x tile
            resident,                                                    # w1
            resident,                                                    # b1
            pl.BlockSpec((None, hid_p, 2 * th), lambda i, k: (k, 0, 0)),  # gate block k
            pl.BlockSpec((th, dim_p), lambda i, k: (k, 0)),              # w2 row block k
            resident,                                                    # b2
        ],
        out_specs=pl.BlockSpec((TM, dim_p), lambda i, k: (i, 0)),
        scratch_shapes=[
            pltpu.VMEM((TM, hid_p), jnp.bfloat16),   # h (fc1 output)
            pltpu.VMEM((TM, dim_p), jnp.float32),    # fc2 accumulator
        ],
        compiler_params=pltpu.CompilerParams(
            dimension_semantics=("parallel", "arbitrary"),
            vmem_limit_bytes=int(vmem_budget),
        ),
        cost_estimate=cost,
    )(x2d, prepared["w1"], prepared["b1"], prepared["wg"],
      prepared["w2"], prepared["b2"])

    return out2d[:M, :dim].astype(jnp.float32).reshape(B, S, dim)


# ----------------------------------------------------------------------------
# Parameter init (matches the PyTorch module's shapes; [in, out] layout, and
# the SwiGLU weight pre-split into its two [hidden, hidden] halves).
# ----------------------------------------------------------------------------
def init_params(key, dim, hidden_dim):
    k1, k2, k3, k4, k5, k6 = jax.random.split(key, 6)
    scale1 = 1.0 / jnp.sqrt(dim)
    scaleh = 1.0 / jnp.sqrt(hidden_dim)
    w1 = jax.random.uniform(k1, (dim, hidden_dim), jnp.float32, -scale1, scale1)
    b1 = jax.random.uniform(k2, (1, hidden_dim), jnp.float32, -scale1, scale1)
    wg_u = jax.random.uniform(k3, (hidden_dim, hidden_dim), jnp.float32, -scaleh, scaleh)
    wg_v = jax.random.uniform(k4, (hidden_dim, hidden_dim), jnp.float32, -scaleh, scaleh)
    w2 = jax.random.uniform(k5, (hidden_dim, dim), jnp.float32, -scaleh, scaleh)
    b2 = jax.random.uniform(k6, (1, dim), jnp.float32, -scaleh, scaleh)
    return (w1, b1, wg_u, wg_v, w2, b2)


def _reference(x, params):
    """Pure-JAX reference mimicking the kernel's bf16-matmul / f32-accumulate numerics."""
    w1, b1, wg_u, wg_v, w2, b2 = params
    xb = x.astype(jnp.bfloat16)
    h = jnp.dot(xb, w1.astype(jnp.bfloat16),
                preferred_element_type=jnp.float32) + b1[0]
    hb = h.astype(jnp.bfloat16)
    u = jnp.dot(hb, wg_u.astype(jnp.bfloat16), preferred_element_type=jnp.float32)
    v = jnp.dot(hb, wg_v.astype(jnp.bfloat16), preferred_element_type=jnp.float32)
    s = (u * (v * jax.nn.sigmoid(v))).astype(jnp.bfloat16)
    return jnp.dot(s, w2.astype(jnp.bfloat16),
                   preferred_element_type=jnp.float32) + b2[0]


if __name__ == "__main__":
    B, S, dim, hidden_dim = 2, 8, 32, 64
    key = jax.random.PRNGKey(0)
    kx, kp = jax.random.split(key)
    x = jax.random.normal(kx, (B, S, dim), jnp.float32)
    params = init_params(kp, dim, hidden_dim)
    prepared = prepare_params(params, dim, hidden_dim)

    out = feed_forward(x, prepared)
    out = jax.block_until_ready(out)

    ref = _reference(x, params)
    assert out.shape == (B, S, dim)
    assert jnp.allclose(out, ref, atol=3e-2, rtol=3e-2), "mismatch vs reference"

    print("KERNEL_OK")
</pallas_src>

<mosaic_0001>
module attributes {stable_mosaic.version = 11 : i64} {
  func.func @_ffn_kernel(%arg0: i32, %arg1: i32, %arg2: memref<16x128xbf16, #tpu.memory_space<vmem>>, %arg3: memref<128x128xbf16, #tpu.memory_space<vmem>>, %arg4: memref<1x128xf32, #tpu.memory_space<vmem>>, %arg5: memref<1x128x256xbf16, #tpu.memory_space<vmem>>, %arg6: memref<128x128xbf16, #tpu.memory_space<vmem>>, %arg7: memref<1x128xf32, #tpu.memory_space<vmem>>, %arg8: memref<16x128xbf16, #tpu.memory_space<vmem>>, %arg9: memref<16x128xbf16, #tpu.memory_space<vmem>>, %arg10: memref<16x128xf32, #tpu.memory_space<vmem>>) attributes {dimension_semantics = [#tpu.dimension_semantics<parallel>, #tpu.dimension_semantics<arbitrary>], iteration_bounds = array<i64: 1, 1>, scalar_prefetch = 0 : i64, scratch_operands = 2 : i64, tpu.core_type = #tpu.core_type<tc>, window_params = [{transform_indices = @transform_0, window_bounds = array<i64: 16, 128>}, {pipeline_mode = #tpu.pipeline_mode<synchronous>, transform_indices = @transform_1, window_bounds = array<i64: 128, 128>}, {pipeline_mode = #tpu.pipeline_mode<synchronous>, transform_indices = @transform_2, window_bounds = array<i64: 1, 128>}, {transform_indices = @transform_3, window_bounds = array<i64: 1, 128, 256>}, {transform_indices = @transform_4, window_bounds = array<i64: 128, 128>}, {pipeline_mode = #tpu.pipeline_mode<synchronous>, transform_indices = @transform_5, window_bounds = array<i64: 1, 128>}, {transform_indices = @transform_6, window_bounds = array<i64: 16, 128>}]} {
    %c0_i32 = arith.constant 0 : i32
    %0 = arith.cmpi eq, %arg1, %c0_i32 : i32
    %1 = arith.extui %0 : i1 to i32
    %c0_i32_0 = arith.constant 0 : i32
    %2 = arith.cmpi ne, %1, %c0_i32_0 : i32
    scf.if %2 {
      %c0_15 = arith.constant 0 : index
      %c0_16 = arith.constant 0 : index
      %25 = vector.load %arg2[%c0_15, %c0_16] : memref<16x128xbf16, #tpu.memory_space<vmem>>, vector<16x128xbf16>
      %c0_17 = arith.constant 0 : index
      %c0_18 = arith.constant 0 : index
      %26 = vector.load %arg3[%c0_17, %c0_18] : memref<128x128xbf16, #tpu.memory_space<vmem>>, vector<128x128xbf16>
      %cst_19 = arith.constant dense<0.000000e+00> : vector<16x128xf32>
      %27 = tpu.matmul %25, %26, %cst_19 {dimension_numbers = #tpu.dot_dimension_numbers<[1], [0], [0], [1], [0, 0, 1, 1], [], []>} : vector<16x128xbf16>, vector<128x128xbf16>, vector<16x128xf32> -> vector<16x128xf32>
      %c0_20 = arith.constant 0 : index
      %c0_21 = arith.constant 0 : index
      %28 = vector.load %arg4[%c0_20, %c0_21] : memref<1x128xf32, #tpu.memory_space<vmem>>, vector<1x128xf32>
      %29 = vector.broadcast %28 : vector<1x128xf32> to vector<16x128xf32>
      %30 = arith.addf %27, %29 : vector<16x128xf32>
      %31 = arith.truncf %30 : vector<16x128xf32> to vector<16x128xbf16>
      %c0_22 = arith.constant 0 : index
      %c0_23 = arith.constant 0 : index
      %32 = vector.load %arg9[%c0_22, %c0_23] : memref<16x128xbf16, #tpu.memory_space<vmem>>, vector<16x128xbf16>
      tpu.vector_store %arg9[%c0_22, %c0_23], %31 {strides = array<i32>} : memref<16x128xbf16, #tpu.memory_space<vmem>>, vector<16x128xbf16>,
      %cst_24 = arith.constant 0.000000e+00 : f32
      %33 = vector.broadcast %cst_24 : f32 to vector<16x128xf32>
      %c0_25 = arith.constant 0 : index
      %c0_26 = arith.constant 0 : index
      %34 = vector.load %arg10[%c0_25, %c0_26] : memref<16x128xf32, #tpu.memory_space<vmem>>, vector<16x128xf32>
      tpu.vector_store %arg10[%c0_25, %c0_26], %33 {strides = array<i32>} : memref<16x128xf32, #tpu.memory_space<vmem>>, vector<16x128xf32>,
    } else {
    }
    %c0 = arith.constant 0 : index
    %c0_1 = arith.constant 0 : index
    %3 = vector.load %arg9[%c0, %c0_1] : memref<16x128xbf16, #tpu.memory_space<vmem>>, vector<16x128xbf16>
    %c0_2 = arith.constant 0 : index
    %c0_3 = arith.constant 0 : index
    %c0_4 = arith.constant 0 : index
    %4 = vector.load %arg5[%c0_2, %c0_3, %c0_4] : memref<1x128x256xbf16, #tpu.memory_space<vmem>>, vector<1x128x256xbf16>
    %5 = vector.shape_cast %4 : vector<1x128x256xbf16> to vector<128x256xbf16>
    %cst = arith.constant dense<0.000000e+00> : vector<16x256xf32>
    %6 = tpu.matmul %3, %5, %cst {dimension_numbers = #tpu.dot_dimension_numbers<[1], [0], [0], [1], [0, 0, 1, 1], [], []>} : vector<16x128xbf16>, vector<128x256xbf16>, vector<16x256xf32> -> vector<16x256xf32>
    %7 = vector.extract_strided_slice %6 {offsets = [0, 0], sizes = [16, 128], strides = [1, 1]} : vector<16x256xf32> to vector<16x128xf32>
    %8 = vector.extract_strided_slice %6 {offsets = [0, 128], sizes = [16, 128], strides = [1, 1]} : vector<16x256xf32> to vector<16x128xf32>
    %9 = arith.negf %8 : vector<16x128xf32>
    %10 = math.exp %9 : vector<16x128xf32>
    %cst_5 = arith.constant 1.000000e+00 : f32
    %11 = vector.broadcast %cst_5 : f32 to vector<16x128xf32>
    %12 = arith.addf %11, %10 : vector<16x128xf32>
    %13 = arith.divf %11, %12 : vector<16x128xf32>
    %14 = arith.mulf %8, %13 : vector<16x128xf32>
    %15 = arith.mulf %7, %14 : vector<16x128xf32>
    %16 = arith.truncf %15 : vector<16x128xf32> to vector<16x128xbf16>
    %c0_6 = arith.constant 0 : index
    %c0_7 = arith.constant 0 : index
    %17 = vector.load %arg10[%c0_6, %c0_7] : memref<16x128xf32, #tpu.memory_space<vmem>>, vector<16x128xf32>
    %c0_8 = arith.constant 0 : index
    %c0_9 = arith.constant 0 : index
    %18 = vector.load %arg6[%c0_8, %c0_9] : memref<128x128xbf16, #tpu.memory_space<vmem>>, vector<128x128xbf16>
    %cst_10 = arith.constant dense<0.000000e+00> : vector<16x128xf32>
    %19 = tpu.matmul %16, %18, %cst_10 {dimension_numbers = #tpu.dot_dimension_numbers<[1], [0], [0], [1], [0, 0, 1, 1], [], []>} : vector<16x128xbf16>, vector<128x128xbf16>, vector<16x128xf32> -> vector<16x128xf32>
    %20 = arith.addf %17, %19 : vector<16x128xf32>
    %c0_11 = arith.constant 0 : index
    %c0_12 = arith.constant 0 : index
    %21 = vector.load %arg10[%c0_11, %c0_12] : memref<16x128xf32, #tpu.memory_space<vmem>>, vector<16x128xf32>
    tpu.vector_store %arg10[%c0_11, %c0_12], %20 {strides = array<i32>} : memref<16x128xf32, #tpu.memory_space<vmem>>, vector<16x128xf32>,
    %c0_i32_13 = arith.constant 0 : i32
    %22 = arith.cmpi eq, %arg1, %c0_i32_13 : i32
    %23 = arith.extui %22 : i1 to i32
    %c0_i32_14 = arith.constant 0 : i32
    %24 = arith.cmpi ne, %23, %c0_i32_14 : i32
    scf.if %24 {
      %c0_15 = arith.constant 0 : index
      %c0_16 = arith.constant 0 : index
      %25 = vector.load %arg10[%c0_15, %c0_16] : memref<16x128xf32, #tpu.memory_space<vmem>>, vector<16x128xf32>
      %c0_17 = arith.constant 0 : index
      %c0_18 = arith.constant 0 : index
      %26 = vector.load %arg7[%c0_17, %c0_18] : memref<1x128xf32, #tpu.memory_space<vmem>>, vector<1x128xf32>
      %27 = vector.broadcast %26 : vector<1x128xf32> to vector<16x128xf32>
      %28 = arith.addf %25, %27 : vector<16x128xf32>
      %29 = arith.truncf %28 : vector<16x128xf32> to vector<16x128xbf16>
      %c0_19 = arith.constant 0 : index
      %c0_20 = arith.constant 0 : index
      %30 = vector.load %arg8[%c0_19, %c0_20] : memref<16x128xbf16, #tpu.memory_space<vmem>>, vector<16x128xbf16>
      tpu.vector_store %arg8[%c0_19, %c0_20], %29 {strides = array<i32>} : memref<16x128xbf16, #tpu.memory_space<vmem>>, vector<16x128xbf16>,
    } else {
    }
    return
  }
  func.func @transform_0(%arg0: i32, %arg1: i32) -> (i32, i32) {
    %c0_i32 = arith.constant 0 : i32
    %c0_i32_0 = arith.constant 0 : i32
    return %arg0, %c0_i32 : i32, i32
  }
  func.func @transform_1(%arg0: i32, %arg1: i32) -> (i32, i32) {
    %c0_i32 = arith.constant 0 : i32
    %c0_i32_0 = arith.constant 0 : i32
    %c0_i32_1 = arith.constant 0 : i32
    return %c0_i32, %c0_i32_0 : i32, i32
  }
  func.func @transform_2(%arg0: i32, %arg1: i32) -> (i32, i32) {
    %c0_i32 = arith.constant 0 : i32
    %c0_i32_0 = arith.constant 0 : i32
    %c0_i32_1 = arith.constant 0 : i32
    return %c0_i32, %c0_i32_0 : i32, i32
  }
  func.func @transform_3(%arg0: i32, %arg1: i32) -> (i32, i32, i32) {
    %c0_i32 = arith.constant 0 : i32
    %c0_i32_0 = arith.constant 0 : i32
    %c0_i32_1 = arith.constant 0 : i32
    return %arg1, %c0_i32, %c0_i32_0 : i32, i32, i32
  }
  func.func @transform_4(%arg0: i32, %arg1: i32) -> (i32, i32) {
    %c0_i32 = arith.constant 0 : i32
    %c0_i32_0 = arith.constant 0 : i32
    return %arg1, %c0_i32 : i32, i32
  }
  func.func @transform_5(%arg0: i32, %arg1: i32) -> (i32, i32) {
    %c0_i32 = arith.constant 0 : i32
    %c0_i32_0 = arith.constant 0 : i32
    %c0_i32_1 = arith.constant 0 : i32
    return %c0_i32, %c0_i32_0 : i32, i32
  }
  func.func @transform_6(%arg0: i32, %arg1: i32) -> (i32, i32) {
    %c0_i32 = arith.constant 0 : i32
    %c0_i32_0 = arith.constant 0 : i32
    return %arg0, %c0_i32 : i32, i32
  }
}

</mosaic_0001>

<llo_original>
// kernel: tpu_custom_call.1
$region0: #{tpu_custom_call.1}
  #allocation0 [shape = 'u32[]', space=smem, size = 0x4, offset = 0x4, fixed_abs, tag = 'smem constant byte address 0x4 - core index']
  #allocation1 [shape = 'u32[144,128]{1,0:T(1,128)}', space=vmem, size = 0x12000, scoped, tag = 'internal scratch']
  #allocation2 [shape = 'bf16[16,128]{1,0:T(8,128)(2,1)}', space=vmem, size = 0x1000, scoped, tag = 'scratch operand']
  #allocation3 [shape = 'f32[16,128]{1,0:T(8,128)}', space=vmem, size = 0x2000, scoped, tag = 'scratch operand']
  %s0 = inlined_call_operand.hbm [shape: bf16[16,128], index: 0, kind: input, shape index: {}]
  %s1 = inlined_call_operand.hbm [shape: bf16[128,128], index: 1, kind: input, shape index: {}]
  %s2 = inlined_call_operand.vmem [shape: f32[1,128], index: 2, kind: input, shape index: {}]
  %s3 = inlined_call_operand.hbm [shape: bf16[1,128,256], index: 3, kind: input, shape index: {}]
  %s4 = inlined_call_operand.hbm [shape: bf16[128,128], index: 4, kind: input, shape index: {}]
  %s5 = inlined_call_operand.vmem [shape: f32[1,128], index: 5, kind: input, shape index: {}]
  %s6 = inlined_call_operand.hbm [shape: bf16[16,128], index: 6, kind: output, shape index: {}]
  %s7 = sld [smem:[#allocation0]]
  $region58: #{tpu_custom_call.1} parent=0
    _
  %s9 = ssub.s32 1, %s7
  %s10 = scalar_select 0, %s9, %s7
  $region1: #{tpu_custom_call.1} parent=0
    #allocation4 [shape = 'u8[4096]{0}', space=vmem, size = 0x1000, scoped, tag = 'input window, operand 0, single buffered']
    #allocation5 [shape = 's32[1]{0}', space=sflag, size = 0x4, scoped, tag = 'scoped memory for tpu_custom_call.1']
    #allocation6 [shape = 's32[1]{0}', space=sflag, size = 0x4, scoped, tag = 'scoped memory for tpu_custom_call.1']
    #allocation7 [shape = 'u8[32768]{0}', space=vmem, size = 0x8000, scoped, tag = 'input window, operand 1, single buffered']
    #allocation8 [shape = 's32[1]{0}', space=sflag, size = 0x4, scoped, tag = 'scoped memory for tpu_custom_call.1']
    #allocation9 [shape = 'u8[65536]{0}', space=vmem, size = 0x10000, scoped, tag = 'input window, operand 3, single buffered']
    #allocation10 [shape = 'u8[32768]{0}', space=vmem, size = 0x8000, scoped, tag = 'input window, operand 4, single buffered']
    #allocation11 [shape = 's32[1]{0}', space=sflag, size = 0x4, scoped, tag = 'scoped memory for tpu_custom_call.1']
    #allocation12 [shape = 'u8[4096]{0}', space=vmem, size = 0x1000, scoped, tag = 'output window, operand 0, single buffered']
    %11 = vsyncpa [#allocation5], 0
    %12 = vsyncpa [#allocation8], 0
    %13 = vsyncpa [#allocation11], 0
    %14 = vsyncpa [#allocation6], 0
    // Predicated region
    $region2: #{tpu_custom_call.1} parent=1 // pred_check
      _
    $region3: #{tpu_custom_call.1} parent=1 // pred_check_branch
      %16 = sbr.rel (0) target = $region5
    $region4: #{tpu_custom_call.1} parent=1 // pred_region
      %s18 = ssub.s32 128, 128
      %19 = vsyncadd [#allocation5], %s18
      %s20 = sshll.u32 [#allocation4], 4
      %s21 = int_to_ptr.vmem [resolvable:$true] %s20
      %26 = dma.hbm_to_vmem [thread:$0]  %s0, 128, %s21, [#allocation5], 64, 64, 4
    $region5: #{tpu_custom_call.1} parent=1 // pred_fallthru
      _
    // Predicated region
    $region6: #{tpu_custom_call.1} parent=1 // pred_check
      _
    $region7: #{tpu_custom_call.1} parent=1 // pred_check_branch
      %28 = sbr.rel (0) target = $region9
    $region8: #{tpu_custom_call.1} parent=1 // pred_region
      %s30 = ssub.s32 1024, 1024
      %31 = vsyncadd [#allocation8], %s30
      %s32 = sshll.u32 [#allocation7], 4
      %s33 = int_to_ptr.vmem [resolvable:$true] %s32
      %38 = dma.hbm_to_vmem [thread:$0]  %s1, 1024, %s33, [#allocation8], 64, 64, 4
    $region9: #{tpu_custom_call.1} parent=1 // pred_fallthru
      _
    // Predicated region
    $region10: #{tpu_custom_call.1} parent=1 // pred_check
      _
    $region11: #{tpu_custom_call.1} parent=1 // pred_check_branch
      %40 = sbr.rel (0) target = $region13
    $region12: #{tpu_custom_call.1} parent=1 // pred_region
      _
    $region13: #{tpu_custom_call.1} parent=1 // pred_fallthru
      _
    // Predicated region
    $region14: #{tpu_custom_call.1} parent=1 // pred_check
      _
    $region15: #{tpu_custom_call.1} parent=1 // pred_check_branch
      %42 = sbr.rel (0) target = $region17
    $region16: #{tpu_custom_call.1} parent=1 // pred_region
      %s44 = ssub.s32 2048, 2048
      %45 = vsyncadd [#allocation8], %s44
      %s46 = sshll.u32 [#allocation9], 4
      %s47 = int_to_ptr.vmem [resolvable:$true] %s46
      %52 = dma.hbm_to_vmem [thread:$0]  %s3, 2048, %s47, [#allocation8], 128, 128, 8
    $region17: #{tpu_custom_call.1} parent=1 // pred_fallthru
      _
    // Predicated region
    $region18: #{tpu_custom_call.1} parent=1 // pred_check
      _
    $region19: #{tpu_custom_call.1} parent=1 // pred_check_branch
      %54 = sbr.rel (0) target = $region21
    $region20: #{tpu_custom_call.1} parent=1 // pred_region
      %s56 = ssub.s32 1024, 1024
      %57 = vsyncadd [#allocation11], %s56
      %s58 = sshll.u32 [#allocation10], 4
      %s59 = int_to_ptr.vmem [resolvable:$true] %s58
      %64 = dma.hbm_to_vmem [thread:$0]  %s4, 1024, %s59, [#allocation11], 64, 64, 4
    $region21: #{tpu_custom_call.1} parent=1 // pred_fallthru
      _
    // Predicated region
    $region22: #{tpu_custom_call.1} parent=1 // pred_check
      _
    $region23: #{tpu_custom_call.1} parent=1 // pred_check_branch
      %66 = sbr.rel (0) target = $region25
    $region24: #{tpu_custom_call.1} parent=1 // pred_region
      _
    $region25: #{tpu_custom_call.1} parent=1 // pred_fallthru
      _
    // Predicated region
    $region26: #{tpu_custom_call.1} parent=1 // pred_check
      _
    $region27: #{tpu_custom_call.1} parent=1 // pred_check_branch
      %68 = sbr.rel (0) target = $region29
    $region28: #{tpu_custom_call.1} parent=1 // pred_region
      %69 = dma.done [#allocation5], 128
    $region29: #{tpu_custom_call.1} parent=1 // pred_fallthru
      _
    // Predicated region
    $region30: #{tpu_custom_call.1} parent=1 // pred_check
      _
    $region31: #{tpu_custom_call.1} parent=1 // pred_check_branch
      %71 = sbr.rel (0) target = $region33
    $region32: #{tpu_custom_call.1} parent=1 // pred_region
      %72 = dma.done [#allocation8], 1024
    $region33: #{tpu_custom_call.1} parent=1 // pred_fallthru
      _
    // Predicated region
    $region34: #{tpu_custom_call.1} parent=1 // pred_check
      _
    $region35: #{tpu_custom_call.1} parent=1 // pred_check_branch
      %74 = sbr.rel (0) target = $region37
    $region36: #{tpu_custom_call.1} parent=1 // pred_region
      %75 = dma.done [#allocation8], 2048
    $region37: #{tpu_custom_call.1} parent=1 // pred_fallthru
      _
    // Predicated region
    $region38: #{tpu_custom_call.1} parent=1 // pred_check
      _
    $region39: #{tpu_custom_call.1} parent=1 // pred_check_branch
      %77 = sbr.rel (0) target = $region41
    $region40: #{tpu_custom_call.1} parent=1 // pred_region
      %78 = dma.done [#allocation11], 1024
    $region41: #{tpu_custom_call.1} parent=1 // pred_fallthru
      _
    %p80 = scmp.eq.s32.totalorder 0, 0
    // Predicated region
    $region42: #{tpu_custom_call.1} parent=1 // pred_check
      %p81 = pneg %p80
    $region43: #{tpu_custom_call.1} parent=1 // pred_check_branch
      %83 = sbr.rel (%p81) target = $region45
    $region44: #{tpu_custom_call.1} parent=1 // pred_region
      %v84 = vld [vmem:[#allocation4] sm:$0xf]
      %v85 = vld [vmem:[#allocation4 + $0x4] sm:$0xf]
      %v86 = vld [vmem:[#allocation7] sm:$0xf]
      %v87 = vld [vmem:[#allocation7 + $0x4] sm:$0xf]
      %v88 = vld [vmem:[#allocation7 + $0x8] sm:$0xf]
      %v89 = vld [vmem:[#allocation7 + $0xc] sm:$0xf]
      %v90 = vld [vmem:[#allocation7 + $0x10] sm:$0xf]
      %v91 = vld [vmem:[#allocation7 + $0x14] sm:$0xf]
      %v92 = vld [vmem:[#allocation7 + $0x18] sm:$0xf]
      %v93 = vld [vmem:[#allocation7 + $0x1c] sm:$0xf]
      %v94 = vld [vmem:[#allocation7 + $0x20] sm:$0xf]
      %v95 = vld [vmem:[#allocation7 + $0x24] sm:$0xf]
      %v96 = vld [vmem:[#allocation7 + $0x28] sm:$0xf]
      %v97 = vld [vmem:[#allocation7 + $0x2c] sm:$0xf]
      %v98 = vld [vmem:[#allocation7 + $0x30] sm:$0xf]
      %v99 = vld [vmem:[#allocation7 + $0x34] sm:$0xf]
      %v100 = vld [vmem:[#allocation7 + $0x38] sm:$0xf]
      %v101 = vld [vmem:[#allocation7 + $0x3c] sm:$0xf]
      %v102 = vld [vmem:[%s2] sm:$0x1]
      %v104 = vlaneseq
      %v105 = vshrl.u32 %v104, 7
      %v106 = vsub.s32 0, %v105
      %v107 = vrot.slane %v102, %v106
      %v111 = vunpack.c.l.b16 %v84
      %v112 = vunpack.c.l.b16 %v85
      %v113 = vpack.c.b16 %v112, %v111
      %v131 = vunpack.c.l.b16 %v86
      %v132 = vunpack.c.l.b16 %v87
      %v133 = vunpack.c.l.b16 %v88
      %v134 = vunpack.c.l.b16 %v89
      %v135 = vunpack.c.l.b16 %v90
      %v136 = vunpack.c.l.b16 %v91
      %v137 = vunpack.c.l.b16 %v92
      %v138 = vunpack.c.l.b16 %v93
      %v139 = vunpack.c.l.b16 %v94
      %v140 = vunpack.c.l.b16 %v95
      %v141 = vunpack.c.l.b16 %v96
      %v142 = vunpack.c.l.b16 %v97
      %v143 = vunpack.c.l.b16 %v98
      %v144 = vunpack.c.l.b16 %v99
      %v145 = vunpack.c.l.b16 %v100
      %v146 = vunpack.c.l.b16 %v101
      %v147 = vpack.c.b16 %v132, %v131
      %v148 = vpack.c.b16 %v134, %v133
      %v149 = vpack.c.b16 %v136, %v135
      %v150 = vpack.c.b16 %v138, %v137
      %v151 = vpack.c.b16 %v140, %v139
      %v152 = vpack.c.b16 %v142, %v141
      %v153 = vpack.c.b16 %v144, %v143
      %v154 = vpack.c.b16 %v146, %v145
      %163 = vmatprep.subr.bf16.mxu0 0
      %164 = vmatpush1.bf16.msra.mxu0 %v154
      %165 = vmatprep.subr.bf16.mxu0 0
      %166 = vmatpush1.bf16.msra.mxu0 %v153
      %167 = vmatprep.subr.bf16.mxu0 0
      %168 = vmatpush1.bf16.msra.mxu0 %v152
      %169 = vmatprep.subr.bf16.mxu0 0
      %170 = vmatpush1.bf16.msra.mxu0 %v151
      %171 = vmatprep.subr.bf16.mxu0 0
      %172 = vmatpush1.bf16.msra.mxu0 %v150
      %173 = vmatprep.subr.bf16.mxu0 0
      %174 = vmatpush1.bf16.msra.mxu0 %v149
      %175 = vmatprep.subr.bf16.mxu0 0
      %176 = vmatpush1.bf16.msra.mxu0 %v148
      %177 = vmatprep.subr.bf16.mxu0 0
      %178 = vmatpush1.bf16.msra.mxu0 %v147
      %179 = vmatprep.subr.bf16.mxu0 0
      %180 = vmatpush2.bf16.msra.mxu0 0
      %181 = vmatprep.subr.bf16.mxu0 0
      %182 = vmatpush2.bf16.msra.mxu0 0
      %183 = vmatprep.subr.bf16.mxu0 0
      %184 = vmatpush2.bf16.msra.mxu0 0
      %185 = vmatprep.subr.bf16.mxu0 0
      %186 = vmatpush2.bf16.msra.mxu0 0
      %187 = vmatprep.subr.bf16.mxu0 0
      %188 = vmatpush2.bf16.msra.mxu0 0
      %189 = vmatprep.subr.bf16.mxu0 0
      %190 = vmatpush2.bf16.msra.mxu0 0
      %191 = vmatprep.subr.bf16.mxu0 0
      %192 = vmatpush2.bf16.msra.mxu0 0
      %193 = vmatprep.subr.bf16.mxu0 0
      %194 = vmatpush2.bf16.msra.mxu0 0
      %195 = vmatprep.mubr.bf16.mxu0 0
      %196 = vmatmul.mubr.bf16.gmra.mxu0 %v113
      %v197 = vpop.f32.mrf.mxu0
      %v198 = vadd.f32 %v107, %v197
      %v199 = vpop.f32.mrf.mxu0
      %v200 = vpop.f32.mrf.mxu0
      %v201 = vadd.f32 %v107, %v200
      %v202 = vpop.f32.mrf.mxu0
      %203 = vdwg.mxu0
      %v204 = vpack.c.bf16 %v201, %v198
      %v206 = vunpack.c.l.b16 %v204
      %v207 = vunpack.c.h.b16 %v204
      %v208 = vpack.c.b16 %v206, %v206
      %v209 = vpack.c.b16 %v207, %v207
      %212 = vst [vmem:[#allocation2] sm:$0xf] %v208
      %213 = vst [vmem:[#allocation2 + $0x4] sm:$0xf] %v209
      %214 = vst [vmem:[#allocation3] sm:$0xff] 0.0
      %215 = vst [vmem:[#allocation3 + $0x8] sm:$0xff] 0.0
    $region45: #{tpu_custom_call.1} parent=1 // pred_fallthru
      _
    %v216 = vld [vmem:[#allocation2] sm:$0xf]
    %v217 = vld [vmem:[#allocation2 + $0x4] sm:$0xf]
    %v218 = vld [vmem:[#allocation9] sm:$0xff]
    %v219 = vld [vmem:[#allocation9 + $0x8] sm:$0xff]
    %v220 = vld [vmem:[#allocation9 + $0x10] sm:$0xff]
    %v221 = vld [vmem:[#allocation9 + $0x18] sm:$0xff]
    %v222 = vld [vmem:[#allocation9 + $0x20] sm:$0xff]
    %v223 = vld [vmem:[#allocation9 + $0x28] sm:$0xff]
    %v224 = vld [vmem:[#allocation9 + $0x30] sm:$0xff]
    %v225 = vld [vmem:[#allocation9 + $0x38] sm:$0xff]
    %v226 = vld [vmem:[#allocation9 + $0x40] sm:$0xff]
    %v227 = vld [vmem:[#allocation9 + $0x48] sm:$0xff]
    %v228 = vld [vmem:[#allocation9 + $0x50] sm:$0xff]
    %v229 = vld [vmem:[#allocation9 + $0x58] sm:$0xff]
    %v230 = vld [vmem:[#allocation9 + $0x60] sm:$0xff]
    %v231 = vld [vmem:[#allocation9 + $0x68] sm:$0xff]
    %v232 = vld [vmem:[#allocation9 + $0x70] sm:$0xff]
    %v233 = vld [vmem:[#allocation9 + $0x78] sm:$0xff]
    %v236 = vunpack.c.l.b16 %v216
    %v237 = vunpack.c.l.b16 %v217
    %v238 = vpack.c.b16 %v237, %v236
    %v256 = vunpack.c.l.b16 %v218
    %v257 = vunpack.c.h.b16 %v218
    %v258 = vunpack.c.l.b16 %v219
    %v259 = vunpack.c.h.b16 %v219
    %v260 = vunpack.c.l.b16 %v220
    %v261 = vunpack.c.h.b16 %v220
    %v262 = vunpack.c.l.b16 %v221
    %v263 = vunpack.c.h.b16 %v221
    %v264 = vunpack.c.l.b16 %v222
    %v265 = vunpack.c.h.b16 %v222
    %v266 = vunpack.c.l.b16 %v223
    %v267 = vunpack.c.h.b16 %v223
    %v268 = vunpack.c.l.b16 %v224
    %v269 = vunpack.c.h.b16 %v224
    %v270 = vunpack.c.l.b16 %v225
    %v271 = vunpack.c.h.b16 %v225
    %v272 = vunpack.c.l.b16 %v226
    %v273 = vunpack.c.h.b16 %v226
    %v274 = vunpack.c.l.b16 %v227
    %v275 = vunpack.c.h.b16 %v227
    %v276 = vunpack.c.l.b16 %v228
    %v277 = vunpack.c.h.b16 %v228
    %v278 = vunpack.c.l.b16 %v229
    %v279 = vunpack.c.h.b16 %v229
    %v280 = vunpack.c.l.b16 %v230
    %v281 = vunpack.c.h.b16 %v230
    %v282 = vunpack.c.l.b16 %v231
    %v283 = vunpack.c.h.b16 %v231
    %v284 = vunpack.c.l.b16 %v232
    %v285 = vunpack.c.h.b16 %v232
    %v286 = vunpack.c.l.b16 %v233
    %v287 = vunpack.c.h.b16 %v233
    %v288 = vpack.c.b16 %v258, %v256
    %v289 = vpack.c.b16 %v259, %v257
    %v290 = vpack.c.b16 %v262, %v260
    %v291 = vpack.c.b16 %v263, %v261
    %v292 = vpack.c.b16 %v266, %v264
    %v293 = vpack.c.b16 %v267, %v265
    %v294 = vpack.c.b16 %v270, %v268
    %v295 = vpack.c.b16 %v271, %v269
    %v296 = vpack.c.b16 %v274, %v272
    %v297 = vpack.c.b16 %v275, %v273
    %v298 = vpack.c.b16 %v278, %v276
    %v299 = vpack.c.b16 %v279, %v277
    %v300 = vpack.c.b16 %v282, %v280
    %v301 = vpack.c.b16 %v283, %v281
    %v302 = vpack.c.b16 %v286, %v284
    %v303 = vpack.c.b16 %v287, %v285
    %320 = vmatprep.subr.bf16.mxu0 %v303
    %321 = vmatpush1.bf16.msra.mxu0 %v302
    %322 = vmatprep.subr.bf16.mxu0 %v301
    %323 = vmatpush1.bf16.msra.mxu0 %v300
    %324 = vmatprep.subr.bf16.mxu0 %v299
    %325 = vmatpush1.bf16.msra.mxu0 %v298
    %326 = vmatprep.subr.bf16.mxu0 %v297
    %327 = vmatpush1.bf16.msra.mxu0 %v296
    %328 = vmatprep.subr.bf16.mxu0 %v295
    %329 = vmatpush1.bf16.msra.mxu0 %v294
    %330 = vmatprep.subr.bf16.mxu0 %v293
    %331 = vmatpush1.bf16.msra.mxu0 %v292
    %332 = vmatprep.subr.bf16.mxu0 %v291
    %333 = vmatpush1.bf16.msra.mxu0 %v290
    %334 = vmatprep.subr.bf16.mxu0 %v289
    %335 = vmatpush1.bf16.msra.mxu0 %v288
    %336 = vmatprep.subr.bf16.mxu0 0
    %337 = vmatpush2.bf16.msra.mxu0 0
    %338 = vmatprep.subr.bf16.mxu0 0
    %339 = vmatpush2.bf16.msra.mxu0 0
    %340 = vmatprep.subr.bf16.mxu0 0
    %341 = vmatpush2.bf16.msra.mxu0 0
    %342 = vmatprep.subr.bf16.mxu0 0
    %343 = vmatpush2.bf16.msra.mxu0 0
    %344 = vmatprep.subr.bf16.mxu0 0
    %345 = vmatpush2.bf16.msra.mxu0 0
    %346 = vmatprep.subr.bf16.mxu0 0
    %347 = vmatpush2.bf16.msra.mxu0 0
    %348 = vmatprep.subr.bf16.mxu0 0
    %349 = vmatpush2.bf16.msra.mxu0 0
    %350 = vmatprep.subr.bf16.mxu0 0
    %351 = vmatpush2.bf16.msra.mxu0 0
    %352 = vmatprep.mubr.bf16.mxu0 0
    %353 = vmatmul.mubr.bf16.gmra.mxu0 %v238
    %v354 = vpop.f32.mrf.mxu0
    %v355 = vadd.f32 0.0, %v354
    %v356 = vpop.f32.mrf.mxu0
    %v357 = vadd.f32 0.0, %v356
    %v358 = vpop.f32.mrf.mxu0
    %v359 = vadd.f32 0.0, %v358
    %v360 = vpop.f32.mrf.mxu0
    %v361 = vadd.f32 0.0, %v360
    %362 = vdwg.mxu0
    %v363 = vxor.u32 %v357, 2147483648
    %v364 = vxor.u32 %v361, 2147483648
    %v365 = vmul.f32 %v363, 1.442695
    %v366 = vpow.pop %v365
    %v367 = vmul.f32 %v364, 1.442695
    %v368 = vpow.pop %v367
    %v369 = vadd.f32 %v366, 1.0
    %v370 = vadd.f32 %v368, 1.0
    %v371 = vrcp.pop %v369
    %v372 = vmul.f32 1.0, %v371
    %v373 = vrcp.pop %v370
    %v374 = vmul.f32 1.0, %v373
    %v375 = vmul.f32 %v357, %v372
    %v376 = vmul.f32 %v361, %v374
    %v377 = vmul.f32 %v355, %v375
    %v378 = vmul.f32 %v359, %v376
    %v379 = vpack.c.bf16 %v378, %v377
    %v380 = vld [vmem:[#allocation3] sm:$0xff]
    %v381 = vld [vmem:[#allocation3 + $0x8] sm:$0xff]
    %v382 = vld [vmem:[#allocation10] sm:$0xf]
    %v383 = vld [vmem:[#allocation10 + $0x4] sm:$0xf]
    %v384 = vld [vmem:[#allocation10 + $0x8] sm:$0xf]
    %v385 = vld [vmem:[#allocation10 + $0xc] sm:$0xf]
    %v386 = vld [vmem:[#allocation10 + $0x10] sm:$0xf]
    %v387 = vld [vmem:[#allocation10 + $0x14] sm:$0xf]
    %v388 = vld [vmem:[#allocation10 + $0x18] sm:$0xf]
    %v389 = vld [vmem:[#allocation10 + $0x1c] sm:$0xf]
    %v390 = vld [vmem:[#allocation10 + $0x20] sm:$0xf]
    %v391 = vld [vmem:[#allocation10 + $0x24] sm:$0xf]
    %v392 = vld [vmem:[#allocation10 + $0x28] sm:$0xf]
    %v393 = vld [vmem:[#allocation10 + $0x2c] sm:$0xf]
    %v394 = vld [vmem:[#allocation10 + $0x30] sm:$0xf]
    %v395 = vld [vmem:[#allocation10 + $0x34] sm:$0xf]
    %v396 = vld [vmem:[#allocation10 + $0x38] sm:$0xf]
    %v397 = vld [vmem:[#allocation10 + $0x3c] sm:$0xf]
    %v414 = vunpack.c.l.b16 %v382
    %v415 = vunpack.c.l.b16 %v383
    %v416 = vunpack.c.l.b16 %v384
    %v417 = vunpack.c.l.b16 %v385
    %v418 = vunpack.c.l.b16 %v386
    %v419 = vunpack.c.l.b16 %v387
    %v420 = vunpack.c.l.b16 %v388
    %v421 = vunpack.c.l.b16 %v389
    %v422 = vunpack.c.l.b16 %v390
    %v423 = vunpack.c.l.b16 %v391
    %v424 = vunpack.c.l.b16 %v392
    %v425 = vunpack.c.l.b16 %v393
    %v426 = vunpack.c.l.b16 %v394
    %v427 = vunpack.c.l.b16 %v395
    %v428 = vunpack.c.l.b16 %v396
    %v429 = vunpack.c.l.b16 %v397
    %v430 = vpack.c.b16 %v415, %v414
    %v431 = vpack.c.b16 %v417, %v416
    %v432 = vpack.c.b16 %v419, %v418
    %v433 = vpack.c.b16 %v421, %v420
    %v434 = vpack.c.b16 %v423, %v422
    %v435 = vpack.c.b16 %v425, %v424
    %v436 = vpack.c.b16 %v427, %v426
    %v437 = vpack.c.b16 %v429, %v428
    %446 = vmatprep.subr.bf16.mxu0 0
    %447 = vmatpush1.bf16.msra.mxu0 %v437
    %448 = vmatprep.subr.bf16.mxu0 0
    %449 = vmatpush1.bf16.msra.mxu0 %v436
    %450 = vmatprep.subr.bf16.mxu0 0
    %451 = vmatpush1.bf16.msra.mxu0 %v435
    %452 = vmatprep.subr.bf16.mxu0 0
    %453 = vmatpush1.bf16.msra.mxu0 %v434
    %454 = vmatprep.subr.bf16.mxu0 0
    %455 = vmatpush1.bf16.msra.mxu0 %v433
    %456 = vmatprep.subr.bf16.mxu0 0
    %457 = vmatpush1.bf16.msra.mxu0 %v432
    %458 = vmatprep.subr.bf16.mxu0 0
    %459 = vmatpush1.bf16.msra.mxu0 %v431
    %460 = vmatprep.subr.bf16.mxu0 0
    %461 = vmatpush1.bf16.msra.mxu0 %v430
    %462 = vmatprep.subr.bf16.mxu0 0
    %463 = vmatpush2.bf16.msra.mxu0 0
    %464 = vmatprep.subr.bf16.mxu0 0
    %465 = vmatpush2.bf16.msra.mxu0 0
    %466 = vmatprep.subr.bf16.mxu0 0
    %467 = vmatpush2.bf16.msra.mxu0 0
    %468 = vmatprep.subr.bf16.mxu0 0
    %469 = vmatpush2.bf16.msra.mxu0 0
    %470 = vmatprep.subr.bf16.mxu0 0
    %471 = vmatpush2.bf16.msra.mxu0 0
    %472 = vmatprep.subr.bf16.mxu0 0
    %473 = vmatpush2.bf16.msra.mxu0 0
    %474 = vmatprep.subr.bf16.mxu0 0
    %475 = vmatpush2.bf16.msra.mxu0 0
    %476 = vmatprep.subr.bf16.mxu0 0
    %477 = vmatpush2.bf16.msra.mxu0 0
    %478 = vmatprep.mubr.bf16.mxu0 0
    %479 = vmatmul.mubr.bf16.gmra.mxu0 %v379
    %v480 = vpop.f32.mrf.mxu0
    %v481 = vadd.f32 0.0, %v480
    %v482 = vpop.f32.mrf.mxu0
    %v483 = vpop.f32.mrf.mxu0
    %v484 = vadd.f32 0.0, %v483
    %v485 = vpop.f32.mrf.mxu0
    %486 = vdwg.mxu0
    %v487 = vadd.f32 %v380, %v481
    %v488 = vadd.f32 %v381, %v484
    %489 = vst [vmem:[#allocation3] sm:$0xff] %v487
    %490 = vst [vmem:[#allocation3 + $0x8] sm:$0xff] %v488
    // Predicated region
    $region46: #{tpu_custom_call.1} parent=1 // pred_check
      %p491 = pneg %p80
    $region47: #{tpu_custom_call.1} parent=1 // pred_check_branch
      %493 = sbr.rel (%p491) target = $region49
    $region48: #{tpu_custom_call.1} parent=1 // pred_region
      %v494 = vld [vmem:[#allocation3] sm:$0xff]
      %v495 = vld [vmem:[#allocation3 + $0x8] sm:$0xff]
      %v496 = vld [vmem:[%s5] sm:$0x1]
      %v498 = vlaneseq
      %v499 = vshrl.u32 %v498, 7
      %v500 = vsub.s32 0, %v499
      %v501 = vrot.slane %v496, %v500
      %v503 = vadd.f32 %v494, %v501
      %v504 = vadd.f32 %v495, %v501
      %v505 = vpack.c.bf16 %v504, %v503
      %v507 = vunpack.c.l.b16 %v505
      %v508 = vunpack.c.h.b16 %v505
      %v509 = vpack.c.b16 %v507, %v507
      %v510 = vpack.c.b16 %v508, %v508
      %513 = vst [vmem:[#allocation12] sm:$0xf] %v509
      %514 = vst [vmem:[#allocation12 + $0x4] sm:$0xf] %v510
    $region49: #{tpu_custom_call.1} parent=1 // pred_fallthru
      _
    // Predicated region
    $region50: #{tpu_custom_call.1} parent=1 // pred_check
      _
    $region51: #{tpu_custom_call.1} parent=1 // pred_check_branch
      %516 = sbr.rel (0) target = $region53
    $region52: #{tpu_custom_call.1} parent=1 // pred_region
      %s518 = ssub.s32 128, 128
      %519 = vsyncadd [#allocation6], %s518
      %s520 = sshll.u32 [#allocation12], 4
      %s521 = int_to_ptr.vmem [resolvable:$true] %s520
      %526 = dma.vmem_to_hbm [thread:$0]  %s521, 128, %s6, [#allocation6], 64, 64, 4
    $region53: #{tpu_custom_call.1} parent=1 // pred_fallthru
      _
    // Predicated region
    $region54: #{tpu_custom_call.1} parent=1 // pred_check
      _
    $region55: #{tpu_custom_call.1} parent=1 // pred_check_branch
      %528 = sbr.rel (0) target = $region57
    $region56: #{tpu_custom_call.1} parent=1 // pred_region
      %529 = dma.done [#allocation6], 128
    $region57: #{tpu_custom_call.1} parent=1 // pred_fallthru
      _
    %530 = vsyncpa [#allocation5], 1
    %531 = vsyncpa [#allocation8], 1
    %532 = vsyncpa [#allocation11], 1
    %533 = vsyncpa [#allocation6], 1

</llo_original>
